<compile_context>
chip_gen: v5e
topology: v5e:2x2
jax: 0.10.0
libtpu: 0.0.40
codegen_flags: <defaults>
</compile_context>

<pallas_src>
import functools
import numpy as np
import jax
import jax.numpy as jnp
from jax.experimental import pallas as pl
from jax.experimental.pallas import tpu as pltpu


def _round_up(x, m):
    return ((x + m - 1) // m) * m


def _bienc_kernel_train(x_ref, w_ref, b_ref, m_ref, o_ref):
    # x_ref: (K, TN) bf16   w_ref: (Cpad, K) bf16   b_ref: (Cpad, 1) f32
    # m_ref: (Cpad, TN) f32 pre-scaled dropout mask {0., 2.}   o_ref: (Cpad, TN) f32
    y = jnp.dot(w_ref[...], x_ref[...], preferred_element_type=jnp.float32)  # MXU
    y = y + b_ref[...]
    y = jnp.maximum(y, 0.33 * y)          # leaky_relu(negative_slope=0.33)
    y = y * m_ref[...]                    # dropout(p=0.5): mask already holds {0, 2}
    o_ref[...] = y


def _bienc_kernel_eval(x_ref, w_ref, b_ref, o_ref):
    y = jnp.dot(w_ref[...], x_ref[...], preferred_element_type=jnp.float32)  # MXU
    y = y + b_ref[...]
    y = jnp.maximum(y, 0.33 * y)
    o_ref[...] = y


def bien_learning_forward(tfea, nfea, weight, bias, *, seed=0, training=True):
    """Returns (neb, geb) matching biEnLearning.forward (NCHW inputs)."""
    B, Cin, H, W = tfea.shape
    Cout, Cin2, d, kw = weight.shape
    assert Cin2 == 2 * Cin and d == H and kw == 1, "expects kernel height d == H"

    # Glue: concatenation + reshape to matmul form (layout only, no compute).
    neb = jnp.concatenate([tfea, nfea], axis=1)                  # (B, 2*Cin, H, W)
    K = Cin2 * H
    N = B * W
    # x[k, b*W + w] = neb[b, k // H (=ci), k % H (=h), w]
    x = neb.reshape(B, K, W).transpose(1, 0, 2).reshape(K, N)    # (K, B*W)
    wmat = weight.reshape(Cout, K)                               # same ci*d + h ordering

    # Pad to a lane-dense / sublane-full output slab.
    TN = 512 if N > 512 else _round_up(N, 128)   # lane tile (multiple of 128)
    Npad = _round_up(N, TN)
    Cpad = _round_up(Cout, 8)

    x_p = jnp.zeros((K, Npad), jnp.bfloat16).at[:, :N].set(x.astype(jnp.bfloat16))
    w_p = jnp.zeros((Cpad, K), jnp.bfloat16).at[:Cout, :].set(wmat.astype(jnp.bfloat16))
    b_p = jnp.zeros((Cpad, 1), jnp.float32).at[:Cout, 0].set(bias.astype(jnp.float32))

    grid = (Npad // TN,)
    in_specs = [
        pl.BlockSpec((K, TN), lambda j: (0, j)),
        pl.BlockSpec((Cpad, K), lambda j: (0, 0)),
        pl.BlockSpec((Cpad, 1), lambda j: (0, 0)),
    ]
    inputs = [x_p, w_p, b_p]
    kernel = _bienc_kernel_eval

    if training:
        # F.dropout default (training=True, p=0.5): keep with prob 0.5, scale by 2.
        # TODO(synk): torch-RNG-exact dropout mask is not reproducible in JAX; mask is
        # drawn with jax.random in the wrapper and applied (fused) inside the kernel.
        keep = jax.random.bernoulli(jax.random.PRNGKey(seed), 0.5, (Cpad, Npad))
        mask = keep.astype(jnp.float32) * 2.0
        in_specs.append(pl.BlockSpec((Cpad, TN), lambda j: (0, j)))
        inputs.append(mask)
        kernel = _bienc_kernel_train

    out_padded = pl.pallas_call(
        kernel,
        out_shape=jax.ShapeDtypeStruct((Cpad, Npad), jnp.float32),
        grid=grid,
        in_specs=in_specs,
        out_specs=pl.BlockSpec((Cpad, TN), lambda j: (0, j)),
        compiler_params=pltpu.CompilerParams(dimension_semantics=("parallel",)),
    )(*inputs)

    # Strip padding and restore torch's geb.view(B, -1) layout of (B, Cout, 1, W).
    out = out_padded[:Cout, :N]                                  # (Cout, B*W)
    geb = out.reshape(Cout, B, W).transpose(1, 0, 2).reshape(B, Cout * W)
    return neb, geb


if __name__ == "__main__":
    # Small shapes consistent with the module: ind=4 channels each input,
    # spatial H=d=8, W=16, batch B=2.
    B, ind, H, W = 2, 4, 8, 16
    d = H  # kernel height == feature height (self.d in the original module)

    key = jax.random.PRNGKey(0)
    k1, k2, k3, k4 = jax.random.split(key, 4)
    tfea = jax.random.normal(k1, (B, ind, H, W), dtype=jnp.float32)
    nfea = jax.random.normal(k2, (B, ind, H, W), dtype=jnp.float32)

    # Deterministic Conv2d parameter init (shapes from nn.Conv2d(ind*2, ind, (d,1))).
    fan_in = (2 * ind) * d * 1
    bound = 1.0 / np.sqrt(fan_in)
    weight = jax.random.uniform(k3, (ind, 2 * ind, d, 1), jnp.float32, -bound, bound)
    bias = jax.random.uniform(k4, (ind,), jnp.float32, -bound, bound)

    # --- correctness check in eval mode (dropout = identity) against pure-JAX ref ---
    neb_eval, geb_eval = bien_learning_forward(tfea, nfea, weight, bias, training=False)
    neb_ref = jnp.concatenate([tfea, nfea], axis=1)
    # Reference uses the same bf16 operand rounding the MXU path sees (f32 accumulate).
    nb16 = neb_ref.astype(jnp.bfloat16).astype(jnp.float32)
    wb16 = weight.astype(jnp.bfloat16).astype(jnp.float32)
    conv_ref = jnp.einsum("bchw,ochz->bow", nb16, wb16) + bias[None, :, None]
    lrelu_ref = jnp.where(conv_ref >= 0, conv_ref, 0.33 * conv_ref)
    geb_ref = lrelu_ref.reshape(B, -1)
    assert np.allclose(np.asarray(neb_eval), np.asarray(neb_ref), atol=1e-6)
    assert np.allclose(np.asarray(geb_eval), np.asarray(geb_ref), atol=1e-3)

    # --- training-mode run (F.dropout default), as in the PyTorch forward ---
    neb, geb = bien_learning_forward(tfea, nfea, weight, bias, seed=0, training=True)
    jax.block_until_ready((neb, geb))
    assert neb.shape == (B, 2 * ind, H, W)
    assert geb.shape == (B, ind * W)
    # every element is either dropped (0) or kept and scaled by exactly 2
    g = np.asarray(geb)
    gr = np.asarray(geb_ref)
    assert np.all((np.abs(g) < 1e-6) | (np.abs(g - 2.0 * gr) < 1e-3))
    print("KERNEL_OK")
</pallas_src>

<mosaic_0001>
module attributes {stable_mosaic.version = 11 : i64} {
  func.func @_bienc_kernel_eval(%arg0: i32, %arg1: memref<64x128xbf16, #tpu.memory_space<vmem>>, %arg2: memref<8x64xbf16, #tpu.memory_space<vmem>>, %arg3: memref<8x1xf32, #tpu.memory_space<vmem>>, %arg4: memref<8x128xf32, #tpu.memory_space<vmem>>) attributes {dimension_semantics = [#tpu.dimension_semantics<parallel>], iteration_bounds = array<i64: 1>, scalar_prefetch = 0 : i64, scratch_operands = 0 : i64, tpu.core_type = #tpu.core_type<tc>, window_params = [{transform_indices = @transform_0, window_bounds = array<i64: 64, 128>}, {pipeline_mode = #tpu.pipeline_mode<synchronous>, transform_indices = @transform_1, window_bounds = array<i64: 8, 64>}, {pipeline_mode = #tpu.pipeline_mode<synchronous>, transform_indices = @transform_2, window_bounds = array<i64: 8, 1>}, {transform_indices = @transform_3, window_bounds = array<i64: 8, 128>}]} {
    %c0 = arith.constant 0 : index
    %c0_0 = arith.constant 0 : index
    %0 = vector.load %arg2[%c0, %c0_0] : memref<8x64xbf16, #tpu.memory_space<vmem>>, vector<8x64xbf16>
    %c0_1 = arith.constant 0 : index
    %c0_2 = arith.constant 0 : index
    %1 = vector.load %arg1[%c0_1, %c0_2] : memref<64x128xbf16, #tpu.memory_space<vmem>>, vector<64x128xbf16>
    %cst = arith.constant dense<0.000000e+00> : vector<8x128xf32>
    %2 = tpu.matmul %0, %1, %cst {dimension_numbers = #tpu.dot_dimension_numbers<[1], [0], [0], [1], [0, 0, 1, 1], [], []>} : vector<8x64xbf16>, vector<64x128xbf16>, vector<8x128xf32> -> vector<8x128xf32>
    %c0_3 = arith.constant 0 : index
    %c0_4 = arith.constant 0 : index
    %3 = vector.load %arg3[%c0_3, %c0_4] : memref<8x1xf32, #tpu.memory_space<vmem>>, vector<8x1xf32>
    %4 = vector.broadcast %3 : vector<8x1xf32> to vector<8x128xf32>
    %5 = arith.addf %2, %4 : vector<8x128xf32>
    %cst_5 = arith.constant 3.300000e-01 : f32
    %6 = vector.broadcast %cst_5 : f32 to vector<8x128xf32>
    %7 = arith.mulf %6, %5 : vector<8x128xf32>
    %8 = arith.maximumf %5, %7 : vector<8x128xf32>
    %c0_6 = arith.constant 0 : index
    %c0_7 = arith.constant 0 : index
    %9 = vector.load %arg4[%c0_6, %c0_7] : memref<8x128xf32, #tpu.memory_space<vmem>>, vector<8x128xf32>
    tpu.vector_store %arg4[%c0_6, %c0_7], %8 {strides = array<i32>} : memref<8x128xf32, #tpu.memory_space<vmem>>, vector<8x128xf32>,
    return
  }
  func.func @transform_0(%arg0: i32) -> (i32, i32) {
    %c0_i32 = arith.constant 0 : i32
    %c0_i32_0 = arith.constant 0 : i32
    return %c0_i32, %arg0 : i32, i32
  }
  func.func @transform_1(%arg0: i32) -> (i32, i32) {
    %c0_i32 = arith.constant 0 : i32
    %c0_i32_0 = arith.constant 0 : i32
    %c0_i32_1 = arith.constant 0 : i32
    return %c0_i32, %c0_i32_0 : i32, i32
  }
  func.func @transform_2(%arg0: i32) -> (i32, i32) {
    %c0_i32 = arith.constant 0 : i32
    %c0_i32_0 = arith.constant 0 : i32
    %c0_i32_1 = arith.constant 0 : i32
    return %c0_i32, %c0_i32_0 : i32, i32
  }
  func.func @transform_3(%arg0: i32) -> (i32, i32) {
    %c0_i32 = arith.constant 0 : i32
    %c0_i32_0 = arith.constant 0 : i32
    return %c0_i32, %arg0 : i32, i32
  }
}

</mosaic_0001>

<llo_original>
// kernel: tpu_custom_call.1
$region0: #{tpu_custom_call.1}
  #allocation0 [shape = 'u32[]', space=smem, size = 0x4, offset = 0x4, fixed_abs, tag = 'smem constant byte address 0x4 - core index']
  #allocation1 [shape = 'u32[72,128]{1,0:T(1,128)}', space=vmem, size = 0x9000, scoped, tag = 'internal scratch']
  %s0 = inlined_call_operand.hbm [shape: bf16[64,128], index: 0, kind: input, shape index: {}]
  %s1 = inlined_call_operand.vmem [shape: bf16[8,64], index: 1, kind: input, shape index: {}]
  %s2 = inlined_call_operand.vmem [shape: f32[8,1], index: 2, kind: input, shape index: {}]
  %s3 = inlined_call_operand.hbm [shape: f32[8,128], index: 3, kind: output, shape index: {}]
  %s4 = sld [smem:[#allocation0]]
  $region26: #{tpu_custom_call.1} parent=0
    _
  %s6 = ssub.s32 1, %s4
  %s7 = scalar_select 0, %s6, %s4
  $region1: #{tpu_custom_call.1} parent=0
    #allocation2 [shape = 'u8[16384]{0}', space=vmem, size = 0x4000, scoped, tag = 'input window, operand 0, single buffered']
    #allocation3 [shape = 's32[1]{0}', space=sflag, size = 0x4, scoped, tag = 'scoped memory for tpu_custom_call.1']
    #allocation4 [shape = 's32[1]{0}', space=sflag, size = 0x4, scoped, tag = 'scoped memory for tpu_custom_call.1']
    #allocation5 [shape = 'u8[4096]{0}', space=vmem, size = 0x1000, scoped, tag = 'output window, operand 0, single buffered']
    %8 = vsyncpa [#allocation3], 0
    %9 = vsyncpa [#allocation4], 0
    // Predicated region
    $region2: #{tpu_custom_call.1} parent=1 // pred_check
      _
    $region3: #{tpu_custom_call.1} parent=1 // pred_check_branch
      %11 = sbr.rel (0) target = $region5
    $region4: #{tpu_custom_call.1} parent=1 // pred_region
      %13 = vsyncadd [#allocation3], 0
      %s14 = sshll.u32 %s0, 4
      %s15 = int_to_ptr.hbm [resolvable:$true] %s14
      %s16 = sshll.u32 [#allocation2], 4
      %s17 = int_to_ptr.vmem [resolvable:$true] %s16
      %22 = dma.hbm_to_vmem [thread:$0]  %s15, 512, %s17, [#allocation3], 64, 64, 4
    $region5: #{tpu_custom_call.1} parent=1 // pred_fallthru
      _
    // Predicated region
    $region6: #{tpu_custom_call.1} parent=1 // pred_check
      _
    $region7: #{tpu_custom_call.1} parent=1 // pred_check_branch
      %24 = sbr.rel (0) target = $region9
    $region8: #{tpu_custom_call.1} parent=1 // pred_region
      _
    $region9: #{tpu_custom_call.1} parent=1 // pred_fallthru
      _
    // Predicated region
    $region10: #{tpu_custom_call.1} parent=1 // pred_check
      _
    $region11: #{tpu_custom_call.1} parent=1 // pred_check_branch
      %26 = sbr.rel (0) target = $region13
    $region12: #{tpu_custom_call.1} parent=1 // pred_region
      _
    $region13: #{tpu_custom_call.1} parent=1 // pred_fallthru
      _
    // Predicated region
    $region14: #{tpu_custom_call.1} parent=1 // pred_check
      _
    $region15: #{tpu_custom_call.1} parent=1 // pred_check_branch
      %28 = sbr.rel (0) target = $region17
    $region16: #{tpu_custom_call.1} parent=1 // pred_region
      %30 = dma.done [#allocation3], 512
    $region17: #{tpu_custom_call.1} parent=1 // pred_fallthru
      _
    %v32 = vld [vmem:[%s1] sm:$0xf]
    %v33 = vld [vmem:[#allocation2] sm:$0xf]
    %v34 = vld [vmem:[#allocation2 + $0x4] sm:$0xf]
    %v35 = vld [vmem:[#allocation2 + $0x8] sm:$0xf]
    %v36 = vld [vmem:[#allocation2 + $0xc] sm:$0xf]
    %v37 = vld [vmem:[#allocation2 + $0x10] sm:$0xf]
    %v38 = vld [vmem:[#allocation2 + $0x14] sm:$0xf]
    %v39 = vld [vmem:[#allocation2 + $0x18] sm:$0xf]
    %v40 = vld [vmem:[#allocation2 + $0x1c] sm:$0xf]
    %v41 = vld [vmem:[%s2] sm:$0xff]
    %43 = vset.pattern.permute.xlu0 0
    %44 = vperm.xlu0 %43, %v41
    %v45 = vpop.permute.xlu0 %44
    %v55 = vunpack.c.l.b16 %v33
    %v56 = vunpack.c.l.b16 %v34
    %v57 = vunpack.c.l.b16 %v35
    %v58 = vunpack.c.l.b16 %v36
    %v59 = vunpack.c.l.b16 %v37
    %v60 = vunpack.c.l.b16 %v38
    %v61 = vunpack.c.l.b16 %v39
    %v62 = vunpack.c.l.b16 %v40
    %v63 = vpack.c.b16 %v56, %v55
    %v64 = vpack.c.b16 %v58, %v57
    %v65 = vpack.c.b16 %v60, %v59
    %v66 = vpack.c.b16 %v62, %v61
    %vm71 = vcmask 523264
    %v73 = vsel %vm71, %v32, 0
    %75 = vmatpush.bf16.msra.mxu0 0
    %76 = vmatpush.bf16.msra.mxu0 0
    %77 = vmatpush.bf16.msra.mxu0 0
    %78 = vmatpush.bf16.msra.mxu0 0
    %79 = vmatpush.bf16.msra.mxu0 %v66
    %80 = vmatpush.bf16.msra.mxu0 %v65
    %81 = vmatpush.bf16.msra.mxu0 %v64
    %82 = vmatpush.bf16.msra.mxu0 %v63
    %83 = vmatmul.bf16.gmra.mxu0 %v73
    %v84 = vpop.f32.mrf.mxu0
    %v85 = vadd.f32 %v45, %v84
    %v86 = vpop.f32.mrf.mxu0
    %87 = vdwg.mxu0
    %v88 = vmul.f32 %v85, 0.33
    %v89 = vmax.f32 %v85, %v88
    %90 = vst [vmem:[#allocation5] sm:$0xff] %v89
    // Predicated region
    $region18: #{tpu_custom_call.1} parent=1 // pred_check
      _
    $region19: #{tpu_custom_call.1} parent=1 // pred_check_branch
      %92 = sbr.rel (0) target = $region21
    $region20: #{tpu_custom_call.1} parent=1 // pred_region
      %94 = vsyncadd [#allocation4], 0
      %s96 = sshll.u32 [#allocation5], 4
      %s97 = int_to_ptr.vmem [resolvable:$true] %s96
      %s98 = sshll.u32 %s3, 4
      %s99 = int_to_ptr.hbm [resolvable:$true] %s98
      %101 = dma.vmem_to_hbm [thread:$0]  %s97, 128, %s99, [#allocation4]
    $region21: #{tpu_custom_call.1} parent=1 // pred_fallthru
      _
    // Predicated region
    $region22: #{tpu_custom_call.1} parent=1 // pred_check
      _
    $region23: #{tpu_custom_call.1} parent=1 // pred_check_branch
      %103 = sbr.rel (0) target = $region25
    $region24: #{tpu_custom_call.1} parent=1 // pred_region
      %105 = dma.done [#allocation4], 128
    $region25: #{tpu_custom_call.1} parent=1 // pred_fallthru
      _
    %106 = vsyncpa [#allocation3], 1
    %107 = vsyncpa [#allocation4], 1

</llo_original>
